<compile_context>
chip_gen: v6e
topology: v6e:2x2x1
jax: 0.10.0
libtpu: 0.0.40
codegen_flags: <defaults>
</compile_context>

<pallas_src>
import functools

import jax
import jax.numpy as jnp
from jax.experimental import pallas as pl
from jax.experimental.pallas import tpu as pltpu


def _round_up(x, m):
    return ((x + m - 1) // m) * m


def _cdiv(a, b):
    return (a + b - 1) // b


def _vmem_capacity_bytes():
    try:
        return int(pltpu.get_tpu_info().vmem_capacity_bytes)
    except Exception:
        return 64 * 1024 * 1024  # conservative (v7x-sized) fallback


def _tile_vmem_bytes(tm, tn, din, x_item, w_item, mm_item, out_item):
    """Rough VMEM estimate for one grid step (double-buffered IO + scratch + f32 LN temps)."""
    return (2 * tm * din * x_item          # x tile (double-buffered)
            + tm * din * mm_item           # LN cache scratch
            + 4 * tm * din * 4             # headroom for live f32 LN temporaries / spills
            + 2 * din * tn * w_item        # weight tile (double-buffered)
            + 2 * tm * tn * out_item       # output tile (double-buffered)
            + 2 * tm * tn * 4              # f32 matmul accumulator / cast temps
            + 4 * din * 4 + 2 * tn * 4)    # gamma/beta/bias


def _pick_tiles(M, din, dout, x_item, w_item, mm_item, out_item, budget):
    # Lane-dense Dout tile, capped at 512; shrink if the weight tile alone blows the budget.
    tn = min(512, _round_up(dout, 128))
    while tn > 128 and _tile_vmem_bytes(8, tn, din, x_item, w_item, mm_item, out_item) > budget:
        tn -= 128
    tn = max(tn, 128)

    # Largest row tile that fits the budget (128 MiB parts get 512, tighter parts fall back).
    m_cap = _round_up(M, 8)
    tm = 8
    for cand in (512, 256, 128, 64, 32, 16, 8):
        if cand > m_cap and cand > 8:
            continue
        if _tile_vmem_bytes(cand, tn, din, x_item, w_item, mm_item, out_item) <= budget:
            tm = cand
            break
    tm = min(tm, m_cap)

    # Guarantee >=2 row-tile steps when possible so the "parallel" row axis can shard across
    # v7x's two TensorCores (costs at most one extra ~0.35us grid step on single-TC parts).
    if M > 8 and _cdiv(M, tm) < 2:
        tm = max(8, _round_up(_cdiv(M, 2), 8))
    return tm, tn


def _linear_layer_kernel(x_ref, gamma_ref, beta_ref, w_ref, b_ref, o_ref, xn_ref, *,
                         eps, use_ln, use_relu):
    # LayerNorm (f32 stats) computed once per row tile, cached in VMEM scratch and reused
    # for every Dout tile (the j axis is "arbitrary" because of this carried dependency).
    @pl.when(pl.program_id(1) == 0)
    def _():
        xf = x_ref[...].astype(jnp.float32)                     # (TM, Din)
        if use_ln:
            mean = jnp.mean(xf, axis=-1, keepdims=True)
            mean_sq = jnp.mean(xf * xf, axis=-1, keepdims=True)
            var = mean_sq - mean * mean                         # single-pass variance
            xn = (xf - mean) * jax.lax.rsqrt(var + eps)
            xn = (xn * gamma_ref[...].astype(jnp.float32)
                  + beta_ref[...].astype(jnp.float32))
        else:
            xn = xf
        xn_ref[...] = xn.astype(xn_ref.dtype)

    # TODO(synk): dropout is a no-op in eval mode; training-mode dropout not implemented.
    y = jnp.dot(xn_ref[...], w_ref[...].astype(xn_ref.dtype),
                preferred_element_type=jnp.float32)             # (TM, TN), f32 MXU accumulation
    y = y + b_ref[...].astype(jnp.float32)
    if use_relu:
        y = jnp.maximum(y, 0.0)
    o_ref[...] = y.astype(o_ref.dtype)


def linear_layer_forward(x, gamma, beta, w, b, *, eps=1e-5, layer_norm=True, relu=True,
                         bf16_matmul=True, row_tile=None, col_tile=None):
    """x: (N, L, Din); gamma/beta: (Din,); w: (Din, Dout); b: (Dout,) -> (N, L, Dout)."""
    N, L, Din = x.shape
    Dout = w.shape[1]
    M = N * L

    # MXU operand dtype: bf16 (f32 accumulation) by default — none of v5e/v6e/v7x has a native
    # f32 MXU path, and bf16 halves weight/activation VMEM + HBM traffic. LN stats stay f32.
    if bf16_matmul or (x.dtype == jnp.bfloat16 and w.dtype == jnp.bfloat16):
        mm_dtype = jnp.bfloat16
    else:
        mm_dtype = jnp.float32
    if w.dtype != mm_dtype:
        w = w.astype(mm_dtype)  # one-time host cast == in-kernel cast numerically, cheaper DMA

    x2 = x.reshape(M, Din)
    gamma2 = gamma.reshape(1, Din).astype(jnp.float32)
    beta2 = beta.reshape(1, Din).astype(jnp.float32)
    b2 = b.reshape(1, Dout).astype(jnp.float32)

    x_item = int(jnp.dtype(x.dtype).itemsize)
    w_item = int(jnp.dtype(w.dtype).itemsize)
    mm_item = int(jnp.dtype(mm_dtype).itemsize)
    out_item = x_item

    vmem_cap = _vmem_capacity_bytes()
    vmem_limit = int(vmem_cap * 0.8)            # leave headroom for compiler scratch
    tile_budget = int(vmem_limit * 0.75)

    tm, tn = _pick_tiles(M, Din, Dout, x_item, w_item, mm_item, out_item, tile_budget)
    if row_tile is not None:
        tm = row_tile
    if col_tile is not None:
        tn = col_tile

    # No host-side padding: cdiv grid + Pallas partial edge blocks. Garbage in padded rows/cols
    # only reaches output rows/cols that are masked at store time (per-row LN / per-row matmul).
    grid = (_cdiv(M, tm), _cdiv(Dout, tn))
    n_row_tiles = grid[0]

    kernel = functools.partial(_linear_layer_kernel, eps=eps, use_ln=layer_norm, use_relu=relu)

    cost = pl.CostEstimate(
        flops=2 * M * Din * Dout,
        transcendentals=M if layer_norm else 0,          # one rsqrt per row (LN cached per tile)
        bytes_accessed=(M * Din * x_item                 # x read once
                        + n_row_tiles * Din * Dout * w_item  # weight re-streamed per row tile
                        + M * Dout * out_item            # output write
                        + 2 * Din * 4 + Dout * 4),       # gamma/beta/bias
    )

    # TODO(synk): gamma/beta/bias (constant index_map) could use pipeline_mode=pl.Buffered(1)
    #             to shave a little VMEM; left default for portability.
    # TODO(synk): for small-M / fat-weight shapes, swapping the grid so the weight-column axis
    #             is outer-resident would cut HBM traffic; not needed for these shapes.
    # TODO(synk): very large Din would want a K-reduction grid axis with an f32 accumulator so
    #             the (Din, tn) weight tile need not be fully VMEM-resident.
    out2 = pl.pallas_call(
        kernel,
        out_shape=jax.ShapeDtypeStruct((M, Dout), x.dtype),
        grid_spec=pltpu.PrefetchScalarGridSpec(
            num_scalar_prefetch=0,
            grid=grid,
            in_specs=[
                pl.BlockSpec((tm, Din), lambda i, j: (i, 0)),    # x row tile
                pl.BlockSpec((1, Din), lambda i, j: (0, 0)),     # LayerNorm gamma
                pl.BlockSpec((1, Din), lambda i, j: (0, 0)),     # LayerNorm beta
                pl.BlockSpec((Din, tn), lambda i, j: (0, j)),    # weight column tile
                pl.BlockSpec((1, tn), lambda i, j: (0, j)),      # bias tile
            ],
            out_specs=pl.BlockSpec((tm, tn), lambda i, j: (i, j)),
            scratch_shapes=[pltpu.VMEM((tm, Din), mm_dtype)],    # cached normalized activations
        ),
        compiler_params=pltpu.CompilerParams(
            dimension_semantics=("parallel", "arbitrary"),
            vmem_limit_bytes=vmem_limit,
        ),
        cost_estimate=cost,
    )(x2, gamma2, beta2, w, b2)

    return out2.reshape(N, L, Dout)


def _reference(x, gamma, beta, w, b, eps=1e-5, layer_norm=True, relu=True):
    x = x.astype(jnp.float32)
    if layer_norm:
        mean = jnp.mean(x, axis=-1, keepdims=True)
        var = jnp.mean(jnp.square(x - mean), axis=-1, keepdims=True)
        x = (x - mean) / jnp.sqrt(var + eps)
        x = x * gamma + beta
    y = x @ w.astype(jnp.float32) + b
    if relu:
        y = jnp.maximum(y, 0.0)
    return y


def _make_params(key, in_hsz, out_hsz):
    kw, kb = jax.random.split(key, 2)
    gamma = jnp.ones((in_hsz,), dtype=jnp.float32)
    beta = jnp.zeros((in_hsz,), dtype=jnp.float32)
    # nn.Linear stores weight as (out, in); we keep it transposed as (in, out) for the kernel.
    w = (jax.random.normal(kw, (in_hsz, out_hsz), dtype=jnp.float32)
         * (1.0 / jnp.sqrt(jnp.float32(in_hsz))))
    b = jax.random.normal(kb, (out_hsz,), dtype=jnp.float32) * 0.01
    return gamma, beta, w, b


if __name__ == "__main__":
    key = jax.random.PRNGKey(0)
    k1, k2, k3, k4 = jax.random.split(key, 4)

    # Case 1: small (N, L, D) shapes matching the module contract exactly.
    N, L, in_hsz, out_hsz = 2, 8, 32, 64
    x = jax.random.normal(k1, (N, L, in_hsz), dtype=jnp.float32)
    gamma, beta, w, b = _make_params(k2, in_hsz, out_hsz)
    ref = _reference(x, gamma, beta, w, b)

    out_f32 = jax.block_until_ready(
        linear_layer_forward(x, gamma, beta, w, b, bf16_matmul=False))
    assert out_f32.shape == (N, L, out_hsz), out_f32.shape
    assert jnp.allclose(out_f32, ref, atol=1e-4, rtol=1e-4), \
        float(jnp.max(jnp.abs(out_f32 - ref)))

    out_bf16 = jax.block_until_ready(linear_layer_forward(x, gamma, beta, w, b))
    assert out_bf16.shape == (N, L, out_hsz), out_bf16.shape
    assert jnp.allclose(out_bf16, ref, atol=5e-2, rtol=5e-2), \
        float(jnp.max(jnp.abs(out_bf16 - ref)))

    # Case 2: non-divisible shapes -> partial edge blocks, multi-step grid on both axes.
    N2, L2, out_hsz2 = 2, 200, 192            # M = 400 -> 2 row steps; Dout=192 -> tn=256 partial
    x2 = jax.random.normal(k3, (N2, L2, in_hsz), dtype=jnp.float32)
    gamma2, beta2, w2, b2 = _make_params(k4, in_hsz, out_hsz2)
    ref2 = _reference(x2, gamma2, beta2, w2, b2)

    out2 = jax.block_until_ready(
        linear_layer_forward(x2, gamma2, beta2, w2, b2, bf16_matmul=False))
    assert out2.shape == (N2, L2, out_hsz2), out2.shape
    assert jnp.allclose(out2, ref2, atol=1e-4, rtol=1e-4), \
        float(jnp.max(jnp.abs(out2 - ref2)))

    out2b = jax.block_until_ready(linear_layer_forward(x2, gamma2, beta2, w2, b2))
    assert jnp.allclose(out2b, ref2, atol=5e-2, rtol=5e-2), \
        float(jnp.max(jnp.abs(out2b - ref2)))

    # Case 3: layer_norm=False, relu=False branches.
    out3 = jax.block_until_ready(
        linear_layer_forward(x, gamma, beta, w, b, layer_norm=False, relu=False,
                             bf16_matmul=False))
    ref3 = _reference(x, gamma, beta, w, b, layer_norm=False, relu=False)
    assert jnp.allclose(out3, ref3, atol=1e-4, rtol=1e-4), \
        float(jnp.max(jnp.abs(out3 - ref3)))

    print("KERNEL_OK")
</pallas_src>

<mosaic_0001>
module attributes {stable_mosaic.version = 11 : i64} {
  func.func @_linear_layer_kernel(%arg0: i32, %arg1: i32, %arg2: memref<8x32xf32, #tpu.memory_space<vmem>>, %arg3: memref<1x32xf32, #tpu.memory_space<vmem>>, %arg4: memref<1x32xf32, #tpu.memory_space<vmem>>, %arg5: memref<32x128xf32, #tpu.memory_space<vmem>>, %arg6: memref<1x128xf32, #tpu.memory_space<vmem>>, %arg7: memref<8x128xf32, #tpu.memory_space<vmem>>, %arg8: memref<8x32xf32, #tpu.memory_space<vmem>>) attributes {dimension_semantics = [#tpu.dimension_semantics<parallel>, #tpu.dimension_semantics<arbitrary>], iteration_bounds = array<i64: 2, 1>, scalar_prefetch = 0 : i64, scratch_operands = 1 : i64, tpu.core_type = #tpu.core_type<tc>, window_params = [{transform_indices = @transform_0, window_bounds = array<i64: 8, 32>}, {pipeline_mode = #tpu.pipeline_mode<synchronous>, transform_indices = @transform_1, window_bounds = array<i64: 1, 32>}, {pipeline_mode = #tpu.pipeline_mode<synchronous>, transform_indices = @transform_2, window_bounds = array<i64: 1, 32>}, {transform_indices = @transform_3, window_bounds = array<i64: 32, 128>}, {transform_indices = @transform_4, window_bounds = array<i64: 1, 128>}, {transform_indices = @transform_5, window_bounds = array<i64: 8, 128>}]} {
    %c0_i32 = arith.constant 0 : i32
    %0 = arith.cmpi eq, %arg1, %c0_i32 : i32
    %1 = arith.extui %0 : i1 to i32
    %c0_i32_0 = arith.constant 0 : i32
    %2 = arith.cmpi ne, %1, %c0_i32_0 : i32
    scf.if %2 {
      %c0_9 = arith.constant 0 : index
      %c0_10 = arith.constant 0 : index
      %12 = vector.load %arg2[%c0_9, %c0_10] : memref<8x32xf32, #tpu.memory_space<vmem>>, vector<8x32xf32>
      %cst_11 = arith.constant dense<0.000000e+00> : vector<8xf32>
      %13 = vector.multi_reduction <add>, %12, %cst_11 [1] : vector<8x32xf32> to vector<8xf32>
      %14 = vector.shape_cast %13 : vector<8xf32> to vector<8x1xf32>
      %cst_12 = arith.constant 3.200000e+01 : f32
      %15 = vector.broadcast %cst_12 : f32 to vector<8x1xf32>
      %16 = arith.divf %14, %15 : vector<8x1xf32>
      %17 = arith.mulf %12, %12 : vector<8x32xf32>
      %cst_13 = arith.constant dense<0.000000e+00> : vector<8xf32>
      %18 = vector.multi_reduction <add>, %17, %cst_13 [1] : vector<8x32xf32> to vector<8xf32>
      %19 = vector.shape_cast %18 : vector<8xf32> to vector<8x1xf32>
      %cst_14 = arith.constant 3.200000e+01 : f32
      %20 = vector.broadcast %cst_14 : f32 to vector<8x1xf32>
      %21 = arith.divf %19, %20 : vector<8x1xf32>
      %22 = arith.mulf %16, %16 : vector<8x1xf32>
      %23 = arith.subf %21, %22 : vector<8x1xf32>
      %24 = vector.broadcast %16 : vector<8x1xf32> to vector<8x32xf32>
      %25 = arith.subf %12, %24 : vector<8x32xf32>
      %cst_15 = arith.constant 9.99999974E-6 : f32
      %26 = vector.broadcast %cst_15 : f32 to vector<8x1xf32>
      %27 = arith.addf %23, %26 : vector<8x1xf32>
      %28 = math.rsqrt %27 : vector<8x1xf32>
      %29 = vector.broadcast %28 : vector<8x1xf32> to vector<8x32xf32>
      %30 = arith.mulf %25, %29 : vector<8x32xf32>
      %c0_16 = arith.constant 0 : index
      %c0_17 = arith.constant 0 : index
      %31 = vector.load %arg3[%c0_16, %c0_17] : memref<1x32xf32, #tpu.memory_space<vmem>>, vector<1x32xf32>
      %32 = vector.broadcast %31 : vector<1x32xf32> to vector<8x32xf32>
      %33 = arith.mulf %30, %32 : vector<8x32xf32>
      %c0_18 = arith.constant 0 : index
      %c0_19 = arith.constant 0 : index
      %34 = vector.load %arg4[%c0_18, %c0_19] : memref<1x32xf32, #tpu.memory_space<vmem>>, vector<1x32xf32>
      %35 = vector.broadcast %34 : vector<1x32xf32> to vector<8x32xf32>
      %36 = arith.addf %33, %35 : vector<8x32xf32>
      %c0_20 = arith.constant 0 : index
      %c0_21 = arith.constant 0 : index
      %37 = vector.load %arg8[%c0_20, %c0_21] : memref<8x32xf32, #tpu.memory_space<vmem>>, vector<8x32xf32>
      tpu.vector_store %arg8[%c0_20, %c0_21], %36 {strides = array<i32>} : memref<8x32xf32, #tpu.memory_space<vmem>>, vector<8x32xf32>,
    } else {
    }
    %c0 = arith.constant 0 : index
    %c0_1 = arith.constant 0 : index
    %3 = vector.load %arg8[%c0, %c0_1] : memref<8x32xf32, #tpu.memory_space<vmem>>, vector<8x32xf32>
    %c0_2 = arith.constant 0 : index
    %c0_3 = arith.constant 0 : index
    %4 = vector.load %arg5[%c0_2, %c0_3] : memref<32x128xf32, #tpu.memory_space<vmem>>, vector<32x128xf32>
    %cst = arith.constant dense<0.000000e+00> : vector<8x128xf32>
    %5 = tpu.matmul %3, %4, %cst {dimension_numbers = #tpu.dot_dimension_numbers<[1], [0], [0], [1], [0, 0, 1, 1], [], []>} : vector<8x32xf32>, vector<32x128xf32>, vector<8x128xf32> -> vector<8x128xf32>
    %c0_4 = arith.constant 0 : index
    %c0_5 = arith.constant 0 : index
    %6 = vector.load %arg6[%c0_4, %c0_5] : memref<1x128xf32, #tpu.memory_space<vmem>>, vector<1x128xf32>
    %7 = vector.broadcast %6 : vector<1x128xf32> to vector<8x128xf32>
    %8 = arith.addf %5, %7 : vector<8x128xf32>
    %cst_6 = arith.constant 0.000000e+00 : f32
    %9 = vector.broadcast %cst_6 : f32 to vector<8x128xf32>
    %10 = arith.maximumf %8, %9 : vector<8x128xf32>
    %c0_7 = arith.constant 0 : index
    %c0_8 = arith.constant 0 : index
    %11 = vector.load %arg7[%c0_7, %c0_8] : memref<8x128xf32, #tpu.memory_space<vmem>>, vector<8x128xf32>
    tpu.vector_store %arg7[%c0_7, %c0_8], %10 {strides = array<i32>} : memref<8x128xf32, #tpu.memory_space<vmem>>, vector<8x128xf32>,
    return
  }
  func.func @transform_0(%arg0: i32, %arg1: i32) -> (i32, i32) {
    %c0_i32 = arith.constant 0 : i32
    %c0_i32_0 = arith.constant 0 : i32
    return %arg0, %c0_i32 : i32, i32
  }
  func.func @transform_1(%arg0: i32, %arg1: i32) -> (i32, i32) {
    %c0_i32 = arith.constant 0 : i32
    %c0_i32_0 = arith.constant 0 : i32
    %c0_i32_1 = arith.constant 0 : i32
    return %c0_i32, %c0_i32_0 : i32, i32
  }
  func.func @transform_2(%arg0: i32, %arg1: i32) -> (i32, i32) {
    %c0_i32 = arith.constant 0 : i32
    %c0_i32_0 = arith.constant 0 : i32
    %c0_i32_1 = arith.constant 0 : i32
    return %c0_i32, %c0_i32_0 : i32, i32
  }
  func.func @transform_3(%arg0: i32, %arg1: i32) -> (i32, i32) {
    %c0_i32 = arith.constant 0 : i32
    %c0_i32_0 = arith.constant 0 : i32
    return %c0_i32, %arg1 : i32, i32
  }
  func.func @transform_4(%arg0: i32, %arg1: i32) -> (i32, i32) {
    %c0_i32 = arith.constant 0 : i32
    %c0_i32_0 = arith.constant 0 : i32
    return %c0_i32, %arg1 : i32, i32
  }
  func.func @transform_5(%arg0: i32, %arg1: i32) -> (i32, i32) {
    %c0_i32 = arith.constant 0 : i32
    return %arg0, %arg1 : i32, i32
  }
}

</mosaic_0001>

<llo_original>
// kernel: tpu_custom_call.1
$region0: #{tpu_custom_call.1}
  #allocation0 [shape = 'u32[]', space=smem, size = 0x4, offset = 0x4, fixed_abs, tag = 'smem constant byte address 0x4 - core index']
  #allocation1 [shape = 'u32[144,128]{1,0:T(1,128)}', space=vmem, size = 0x12000, scoped, tag = 'internal scratch']
  #allocation2 [shape = 'f32[8,32]{1,0:T(8,128)}', space=vmem, size = 0x1000, scoped, tag = 'scratch operand']
  %s0 = inlined_call_operand.hbm [shape: f32[16,32], index: 0, kind: input, shape index: {}]
  %s1 = inlined_call_operand.vmem [shape: f32[1,32], index: 1, kind: input, shape index: {}]
  %s2 = inlined_call_operand.vmem [shape: f32[1,32], index: 2, kind: input, shape index: {}]
  %s3 = inlined_call_operand.hbm [shape: f32[32,64], index: 3, kind: input, shape index: {}]
  %s4 = inlined_call_operand.vmem [shape: f32[1,64], index: 4, kind: input, shape index: {}]
  %s5 = inlined_call_operand.hbm [shape: f32[16,64], index: 5, kind: output, shape index: {}]
  %s6 = sld [smem:[#allocation0]]
  $region65: #{tpu_custom_call.1} parent=0
    _
  %s8 = ssub.s32 1, %s6
  %s9 = scalar_select 0, %s8, %s6
  $region1: #{tpu_custom_call.1} parent=0
    #allocation3 [shape = 'u8[8192]{0}', space=vmem, size = 0x2000, scoped, tag = 'input window, operand 0']
    #allocation4 [shape = 's32[2]{0}', space=sflag, size = 0x8, scoped, tag = 'scoped memory for tpu_custom_call.1']
    #allocation5 [shape = 's32[2]{0}', space=sflag, size = 0x8, scoped, tag = 'scoped memory for tpu_custom_call.1']
    #allocation6 [shape = 'u8[16384]{0}', space=vmem, size = 0x4000, scoped, tag = 'input window, operand 3, single buffered']
    #allocation7 [shape = 's32[1]{0}', space=sflag, size = 0x4, scoped, tag = 'scoped memory for tpu_custom_call.1']
    #allocation8 [shape = 'u8[8192]{0}', space=vmem, size = 0x2000, scoped, tag = 'output window, operand 0']
    %10 = vsyncpa [#allocation4], 0
    %s11 = scalar_lea.sflag [#allocation4], 1
    %12 = vsyncpa %s11, 0
    %13 = vsyncpa [#allocation7], 0
    %14 = vsyncpa [#allocation5], 0
    %s15 = scalar_lea.sflag [#allocation5], 1
    %16 = vsyncpa %s15, 0
    loop: start=0, step=1, limit=4
    $region2: #{tpu_custom_call.1} parent=1 // loop_pre_header
      _
    $region3: #{tpu_custom_call.1} parent=1 // loop_header
      %s18 = sphi 0, %s22
      %p19 = scmp.ge.s32.totalorder %s18, 4
      %s25 = sphi 0, %s37
      %s26 = sphi 0, %s33
      %s27 = sphi 0, %s25
      %s28 = sphi 0, %s26
      %s29 = sphi 0, %s27
      %s30 = sphi 0, %s28
      %s40 = sphi 0, %s42
      %s43 = sphi 0, %s40
      %s44 = sphi 0, %s43
      %s60 = sphi 0, %s44
      %s64 = sphi 0, %s64
      %s66 = sphi 0, %s64
      %s67 = sphi 0, %s66
      %s81 = sphi 0, %s67
      %s85 = sphi 0, %s85
      %s87 = sphi 0, %s85
      %s88 = sphi 0, %s87
      %s102 = sphi 0, %s88
      %s108 = sphi 0, %s110
      %s111 = sphi 0, %s108
      %s112 = sphi 0, %s111
      %s128 = sphi 0, %s112
      %s134 = sphi 0, %s136
      %s137 = sphi 0, %s134
      %s138 = sphi 0, %s137
      %s154 = sphi 0, %s138
      %s162 = sphi 0, %s164
      %s165 = sphi 0, %s162
      %s166 = sphi 0, %s165
      %s182 = sphi 0, %s166
    $region4: #{tpu_custom_call.1} parent=1 // loop_header_branch
      %21 = sbr.rel (%p19) target = $region8
    $region5: #{tpu_custom_call.1} parent=1 // loop_body
      %s23 = ssub.s32 %s18, 1
      %s24 = ssub.s32 %s18, 2
      %s31 = sadd.s32 1, %s26
      %p32 = scmp.ge.s32.totalorder %s31, 1
      %s33 = scalar_select %p32, 0, %s31
      %s34 = sadd.s32 1, %s25
      %s35 = scalar_select %p32, %s34, %s25
      %p36 = scmp.ge.s32.totalorder %s35, 2
      %s37 = scalar_select %p36, 0, %s35
      %s38 = ssub.s32 %s25, %s37
      %p39 = scmp.eq.s32.totalorder %s38, 0
      %s41 = sadd.s32 %s40, 1
      %s42 = scalar_select %p39, %s40, %s41
      %p45 = pneg %p39
      %p46 = scmp.eq.s32.totalorder %s18, 1
      %p47 = por %p45, %p46
      %p48 = scmp.ne.s32.totalorder %s40, %s43
      %p49 = scmp.eq.s32.totalorder %s18, 0
      %p50 = por %p48, %p49
      %p51 = scmp.ne.s32.totalorder %s40, %s43
      %p52 = scmp.eq.s32.totalorder %s23, 1
      %p53 = por %p51, %p52
      %p54 = scmp.ne.s32.totalorder %s43, %s44
      %p55 = scmp.eq.s32.totalorder %s23, 0
      %p56 = por %p54, %p55
      %p57 = scmp.ne.s32.totalorder %s43, %s44
      %p58 = scmp.eq.s32.totalorder %s24, 1
      %p59 = por %p57, %p58
      %p61 = scmp.ne.s32.totalorder %s44, %s60
      %p62 = scmp.eq.s32.totalorder %s24, 0
      %p63 = por %p61, %p62
      %s65 = sadd.s32 %s64, 1
      %p68 = scmp.eq.s32.totalorder %s18, 1
      %p69 = scmp.ne.s32.totalorder %s64, %s66
      %p70 = scmp.eq.s32.totalorder %s18, 0
      %p71 = por %p69, %p70
      %p72 = scmp.ne.s32.totalorder %s64, %s66
      %p73 = scmp.eq.s32.totalorder %s23, 1
      %p74 = por %p72, %p73
      %p75 = scmp.ne.s32.totalorder %s66, %s67
      %p76 = scmp.eq.s32.totalorder %s23, 0
      %p77 = por %p75, %p76
      %p78 = scmp.ne.s32.totalorder %s66, %s67
      %p79 = scmp.eq.s32.totalorder %s24, 1
      %p80 = por %p78, %p79
      %p82 = scmp.ne.s32.totalorder %s67, %s81
      %p83 = scmp.eq.s32.totalorder %s24, 0
      %p84 = por %p82, %p83
      %s86 = sadd.s32 %s85, 1
      %p89 = scmp.eq.s32.totalorder %s18, 1
      %p90 = scmp.ne.s32.totalorder %s85, %s87
      %p91 = scmp.eq.s32.totalorder %s18, 0
      %p92 = por %p90, %p91
      %p93 = scmp.ne.s32.totalorder %s85, %s87
      %p94 = scmp.eq.s32.totalorder %s23, 1
      %p95 = por %p93, %p94
      %p96 = scmp.ne.s32.totalorder %s87, %s88
      %p97 = scmp.eq.s32.totalorder %s23, 0
      %p98 = por %p96, %p97
      %p99 = scmp.ne.s32.totalorder %s87, %s88
      %p100 = scmp.eq.s32.totalorder %s24, 1
      %p101 = por %p99, %p100
      %p103 = scmp.ne.s32.totalorder %s88, %s102
      %p104 = scmp.eq.s32.totalorder %s24, 0
      %p105 = por %p103, %p104
      %s106 = ssub.s32 %s26, %s33
      %p107 = scmp.eq.s32.totalorder %s106, 0
      %s109 = sadd.s32 %s108, 1
      %s110 = scalar_select %p107, %s108, %s109
      %p113 = pneg %p107
      %p114 = scmp.eq.s32.totalorder %s18, 1
      %p115 = por %p113, %p114
      %p116 = scmp.ne.s32.totalorder %s108, %s111
      %p117 = scmp.eq.s32.totalorder %s18, 0
      %p118 = por %p116, %p117
      %p119 = scmp.ne.s32.totalorder %s108, %s111
      %p120 = scmp.eq.s32.totalorder %s23, 1
      %p121 = por %p119, %p120
      %p122 = scmp.ne.s32.totalorder %s111, %s112
      %p123 = scmp.eq.s32.totalorder %s23, 0
      %p124 = por %p122, %p123
      %p125 = scmp.ne.s32.totalorder %s111, %s112
      %p126 = scmp.eq.s32.totalorder %s24, 1
      %p127 = por %p125, %p126
      %p129 = scmp.ne.s32.totalorder %s112, %s128
      %p130 = scmp.eq.s32.totalorder %s24, 0
      %p131 = por %p129, %p130
      %s132 = ssub.s32 %s26, %s33
      %p133 = scmp.eq.s32.totalorder %s132, 0
      %s135 = sadd.s32 %s134, 1
      %s136 = scalar_select %p133, %s134, %s135
      %p139 = pneg %p133
      %p140 = scmp.eq.s32.totalorder %s18, 1
      %p141 = por %p139, %p140
      %p142 = scmp.ne.s32.totalorder %s134, %s137
      %p143 = scmp.eq.s32.totalorder %s18, 0
      %p144 = por %p142, %p143
      %p145 = scmp.ne.s32.totalorder %s134, %s137
      %p146 = scmp.eq.s32.totalorder %s23, 1
      %p147 = por %p145, %p146
      %p148 = scmp.ne.s32.totalorder %s137, %s138
      %p149 = scmp.eq.s32.totalorder %s23, 0
      %p150 = por %p148, %p149
      %p151 = scmp.ne.s32.totalorder %s137, %s138
      %p152 = scmp.eq.s32.totalorder %s24, 1
      %p153 = por %p151, %p152
      %p155 = scmp.ne.s32.totalorder %s138, %s154
      %p156 = scmp.eq.s32.totalorder %s24, 0
      %p157 = por %p155, %p156
      %s158 = ssub.s32 %s25, %s37
      %s159 = ssub.s32 %s26, %s33
      %s160 = sor.u32 %s158, %s159
      %p161 = scmp.eq.s32.totalorder %s160, 0
      %s163 = sadd.s32 %s162, 1
      %s164 = scalar_select %p161, %s162, %s163
      %p167 = pneg %p161
      %p168 = scmp.eq.s32.totalorder %s18, 1
      %p169 = por %p167, %p168
      %p170 = scmp.ne.s32.totalorder %s162, %s165
      %p171 = scmp.eq.s32.totalorder %s18, 0
      %p172 = por %p170, %p171
      %p173 = scmp.ne.s32.totalorder %s162, %s165
      %p174 = scmp.eq.s32.totalorder %s23, 1
      %p175 = por %p173, %p174
      %p176 = scmp.ne.s32.totalorder %s165, %s166
      %p177 = scmp.eq.s32.totalorder %s23, 0
      %p178 = por %p176, %p177
      %p179 = scmp.ne.s32.totalorder %s165, %s166
      %p180 = scmp.eq.s32.totalorder %s24, 1
      %p181 = por %p179, %p180
      %p183 = scmp.ne.s32.totalorder %s166, %s182
      %p184 = scmp.eq.s32.totalorder %s24, 0
      %p185 = por %p183, %p184
      %p186 = scmp.le.s32.totalorder 1, %s18
      %p187 = scmp.lt.s32.totalorder %s18, 3
      %p188 = pnand %p186, %p187
      %p189 = pneg %p188
      // Predicated region
      $region9: #{tpu_custom_call.1} parent=5 // pred_check
        _
      $region10: #{tpu_custom_call.1} parent=5 // pred_check_branch
        %191 = sbr.rel (%p188) target = $region12
      $region11: #{tpu_custom_call.1} parent=5 // pred_region
        %s192 = ssub.s32 %s18, 1
        // Predicated region
        $region13: #{tpu_custom_call.1} parent=11 // pred_check
          %p193 = pneg %p77
        $region14: #{tpu_custom_call.1} parent=11 // pred_check_branch
          %195 = sbr.rel (%p193) target = $region16
        $region15: #{tpu_custom_call.1} parent=11 // pred_region
          _
        $region16: #{tpu_custom_call.1} parent=11 // pred_fallthru
          _
        // Predicated region
        $region17: #{tpu_custom_call.1} parent=11 // pred_check
          %p196 = pneg %p98
        $region18: #{tpu_custom_call.1} parent=11 // pred_check_branch
          %198 = sbr.rel (%p196) target = $region20
        $region19: #{tpu_custom_call.1} parent=11 // pred_region
          _
        $region20: #{tpu_custom_call.1} parent=11 // pred_fallthru
          _
        // Predicated region
        $region21: #{tpu_custom_call.1} parent=11 // pred_check
          %p199 = pneg %p124
        $region22: #{tpu_custom_call.1} parent=11 // pred_check_branch
          %201 = sbr.rel (%p199) target = $region24
        $region23: #{tpu_custom_call.1} parent=11 // pred_region
          %s203 = ssub.s32 512, 512
          %204 = vsyncadd [#allocation7], %s203
          %s205 = smul.addr %s28, 128
          %s206 = scalar_lea.hbm %s3, %s205
          %s207 = sshll.u32 [#allocation6], 4
          %s208 = int_to_ptr.vmem [resolvable:$true] %s207
          %213 = dma.hbm_to_vmem [thread:$0]  %s206, 512, %s208, [#allocation7], 128, 128, 8
        $region24: #{tpu_custom_call.1} parent=11 // pred_fallthru
          _
        // Predicated region
        $region25: #{tpu_custom_call.1} parent=11 // pred_check
          %p214 = pneg %p150
        $region26: #{tpu_custom_call.1} parent=11 // pred_check_branch
          %216 = sbr.rel (%p214) target = $region28
        $region27: #{tpu_custom_call.1} parent=11 // pred_region
          %p217 = scmp.lt.s32.totalorder %s28, 0
          %s218 = scalar_select %p217, %s28, 0
          %s219 = scalar_lea.vmem %s4, %s218
        $region28: #{tpu_custom_call.1} parent=11 // pred_fallthru
          _
      $region12: #{tpu_custom_call.1} parent=5 // pred_fallthru
        _
      %p220 = scmp.lt.s32.totalorder %s18, 2
      // Predicated region
      $region29: #{tpu_custom_call.1} parent=5 // pred_check
        %p221 = pneg %p220
      $region30: #{tpu_custom_call.1} parent=5 // pred_check_branch
        %223 = sbr.rel (%p221) target = $region32
      $region31: #{tpu_custom_call.1} parent=5 // pred_region
        // Predicated region
        $region33: #{tpu_custom_call.1} parent=31 // pred_check
          %p224 = pneg %p50
        $region34: #{tpu_custom_call.1} parent=31 // pred_check_branch
          %226 = sbr.rel (%p224) target = $region36
        $region35: #{tpu_custom_call.1} parent=31 // pred_region
          %s227 = sand.u32 %s40, 1
          %s228 = scalar_lea.sflag [#allocation4], %s227
          %s229 = sand.u32 %s40, 1
          %s230 = smul.addr %s229, 8
          %s231 = scalar_lea.vmem [#allocation3], %s230
          %s233 = ssub.s32 128, 128
          %234 = vsyncadd %s228, %s233
          %s235 = smul.addr %s25, 128
          %s236 = scalar_lea.hbm %s0, %s235
          %s238 = sshll.u32 %s231, 4
          %s239 = int_to_ptr.vmem [resolvable:$true] %s238
          %241 = dma.hbm_to_vmem [thread:$0]  %s236, 128, %s239, %s228
        $region36: #{tpu_custom_call.1} parent=31 // pred_fallthru
          _
      $region32: #{tpu_custom_call.1} parent=5 // pred_fallthru
        _
      %p242 = scmp.le.s32.totalorder 1, %s18
      %p243 = scmp.lt.s32.totalorder %s18, 3
      %p244 = pnand %p242, %p243
      %p245 = pneg %p244
      // Predicated region
      $region37: #{tpu_custom_call.1} parent=5 // pred_check
        _
      $region38: #{tpu_custom_call.1} parent=5 // pred_check_branch
        %247 = sbr.rel (%p244) target = $region40
      $region39: #{tpu_custom_call.1} parent=5 // pred_region
        %s248 = ssub.s32 %s18, 1
        %s249 = sand.u32 %s43, 1
        %s250 = scalar_lea.sflag [#allocation4], %s249
        %s251 = sand.u32 %s43, 1
        %s252 = smul.addr %s251, 8
        %s253 = scalar_lea.vmem [#allocation3], %s252
        // Predicated region
        $region41: #{tpu_custom_call.1} parent=39 // pred_check
          %p254 = pneg %p56
        $region42: #{tpu_custom_call.1} parent=39 // pred_check_branch
          %256 = sbr.rel (%p254) target = $region44
        $region43: #{tpu_custom_call.1} parent=39 // pred_region
          %257 = dma.done %s250, 128
        $region44: #{tpu_custom_call.1} parent=39 // pred_fallthru
          _
        // Predicated region
        $region45: #{tpu_custom_call.1} parent=39 // pred_check
          %p258 = pneg %p124
        $region46: #{tpu_custom_call.1} parent=39 // pred_check_branch
          %260 = sbr.rel (%p258) target = $region48
        $region47: #{tpu_custom_call.1} parent=39 // pred_region
          %261 = dma.done [#allocation7], 512
        $region48: #{tpu_custom_call.1} parent=39 // pred_fallthru
          _
        %s262 = sand.u32 %s43, 1
        %s263 = scalar_lea.sflag [#allocation4], %s262
        %s264 = sand.u32 %s43, 1
        %s265 = smul.addr %s264, 8
        %s266 = scalar_lea.vmem [#allocation3], %s265
        %p267 = pneg %p56
        %p268 = pneg %p53
        %p269 = pneg %p77
        %p270 = pneg %p74
        %p271 = pneg %p98
        %p272 = pneg %p95
        %p273 = pneg %p124
        %p274 = pneg %p121
        %p275 = scmp.lt.s32.totalorder %s28, 0
        %s276 = scalar_select %p275, %s28, 0
        %s277 = scalar_lea.vmem %s4, %s276
        %p278 = pneg %p150
        %p279 = pneg %p147
        %p280 = pneg %p178
        %p281 = pneg %p175
        %s282 = sand.u32 %s165, 1
        %s283 = scalar_lea.sflag [#allocation5], %s282
        %s284 = sand.u32 %s165, 1
        %s285 = smul.addr %s284, 8
        %s286 = scalar_lea.vmem [#allocation8], %s285
        %p287 = scmp.lt.s32.totalorder %s28, 0
        %s288 = scalar_select %p287, %s28, 0
        %s289 = scalar_lea.vmem %s4, %s288
        %p290 = scmp.eq.s32.totalorder %s28, 0
        // Predicated region
        $region49: #{tpu_custom_call.1} parent=39 // pred_check
          %p291 = pneg %p290
        $region50: #{tpu_custom_call.1} parent=39 // pred_check_branch
          %293 = sbr.rel (%p291) target = $region52
        $region51: #{tpu_custom_call.1} parent=39 // pred_region
          %v294 = vld [vmem:[%s253] sm:$0xff]
          %vm295 = vcmask 261120
          %v296 = vsel %vm295, %v294, 0.0
          %297 = vadd.xlane.f32.xlu0 %v296
          %v298 = vpop.xlane.xlu0 %297
          %v299 = vrcp.pop 32.0
          %v300 = vmul.f32 %v298, %v299
          %v301 = vmul.f32 %v294, %v294
          %v302 = vsel %vm295, %v301, 0.0
          %303 = vadd.xlane.f32.xlu0 %v302
          %v304 = vpop.xlane.xlu0 %303
          %v305 = vmul.f32 %v304, %v299
          %v306 = vmul.f32 %v300, %v300
          %v307 = vsub.f32 %v305, %v306
          %v308 = vsub.f32 %v294, %v300
          %v309 = vadd.f32 %v307, 1e-05
          %v310 = vrsqrt.pop %v309
          %v311 = vmul.f32 %v308, %v310
          %v312 = vld [vmem:[%s1] sm:$0x1]
          %v314 = vlaneseq
          %v315 = vshrl.u32 %v314, 7
          %v316 = vsub.s32 0, %v315
          %v317 = vrot.slane %v312, %v316
          %v319 = vmul.f32 %v311, %v317
          %v320 = vld [vmem:[%s2] sm:$0x1]
          %v322 = vlaneseq
          %v323 = vshrl.u32 %v322, 7
          %v324 = vsub.s32 0, %v323
          %v325 = vrot.slane %v320, %v324
          %v327 = vadd.f32 %v319, %v325
          %328 = vst.msk [vmem:[#allocation2] sm:$0xff] %vm295, %v327
        $region52: #{tpu_custom_call.1} parent=39 // pred_fallthru
          _
        %v329 = vld [vmem:[#allocation2] sm:$0xff]
        %v330 = vld [vmem:[#allocation6] sm:$0xff]
        %v331 = vld [vmem:[#allocation6 + $0x8] sm:$0xff]
        %v332 = vld [vmem:[#allocation6 + $0x10] sm:$0xff]
        %v333 = vld [vmem:[#allocation6 + $0x18] sm:$0xff]
        %v334 = vld [vmem:[%s289] sm:$0x1]
        %v336 = vlaneseq
        %v337 = vshrl.u32 %v336, 7
        %v338 = vsub.s32 0, %v337
        %v339 = vrot.slane %v334, %v338
        %vm341 = vcmask 261120
        %v343 = vsel %vm341, %v329, 0
        %345 = vmatprep.subr.mxu0 0.0
        %346 = vmatpush1.msra.mxu0 0.0
        %347 = vmatprep.subr.mxu0 0.0
        %348 = vmatpush1.msra.mxu0 0.0
        %349 = vmatprep.subr.mxu0 0.0
        %350 = vmatpush1.msra.mxu0 0.0
        %351 = vmatprep.subr.mxu0 0.0
        %352 = vmatpush1.msra.mxu0 0.0
        %353 = vmatprep.subr.mxu0 0.0
        %354 = vmatpush1.msra.mxu0 0.0
        %355 = vmatprep.subr.mxu0 0.0
        %356 = vmatpush1.msra.mxu0 0.0
        %357 = vmatprep.subr.mxu0 0.0
        %358 = vmatpush1.msra.mxu0 0.0
        %359 = vmatprep.subr.mxu0 0.0
        %360 = vmatpush1.msra.mxu0 0.0
        %361 = vmatprep.subr.mxu0 0.0
        %362 = vmatpush1.msra.mxu0 0.0
        %363 = vmatprep.subr.mxu0 0.0
        %364 = vmatpush1.msra.mxu0 0.0
        %365 = vmatprep.subr.mxu0 0.0
        %366 = vmatpush1.msra.mxu0 0.0
        %367 = vmatprep.subr.mxu0 0.0
        %368 = vmatpush1.msra.mxu0 0.0
        %369 = vmatprep.subr.mxu0 0.0
        %370 = vmatpush1.msra.mxu0 %v333
        %371 = vmatprep.subr.mxu0 0.0
        %372 = vmatpush1.msra.mxu0 %v332
        %373 = vmatprep.subr.mxu0 0.0
        %374 = vmatpush1.msra.mxu0 %v331
        %375 = vmatprep.subr.mxu0 0.0
        %376 = vmatpush1.msra.mxu0 %v330
        %377 = vmatprep.subr.mxu0 0.0
        %378 = vmatpush2.msra.mxu0 0.0
        %379 = vmatprep.subr.mxu0 0.0
        %380 = vmatpush2.msra.mxu0 0.0
        %381 = vmatprep.subr.mxu0 0.0
        %382 = vmatpush2.msra.mxu0 0.0
        %383 = vmatprep.subr.mxu0 0.0
        %384 = vmatpush2.msra.mxu0 0.0
        %385 = vmatprep.subr.mxu0 0.0
        %386 = vmatpush2.msra.mxu0 0.0
        %387 = vmatprep.subr.mxu0 0.0
        %388 = vmatpush2.msra.mxu0 0.0
        %389 = vmatprep.subr.mxu0 0.0
        %390 = vmatpush2.msra.mxu0 0.0
        %391 = vmatprep.subr.mxu0 0.0
        %392 = vmatpush2.msra.mxu0 0.0
        %393 = vmatprep.subr.mxu0 0.0
        %394 = vmatpush2.msra.mxu0 0.0
        %395 = vmatprep.subr.mxu0 0.0
        %396 = vmatpush2.msra.mxu0 0.0
        %397 = vmatprep.subr.mxu0 0.0
        %398 = vmatpush2.msra.mxu0 0.0
        %399 = vmatprep.subr.mxu0 0.0
        %400 = vmatpush2.msra.mxu0 0.0
        %401 = vmatprep.subr.mxu0 0.0
        %402 = vmatpush2.msra.mxu0 0.0
        %403 = vmatprep.subr.mxu0 0.0
        %404 = vmatpush2.msra.mxu0 0.0
        %405 = vmatprep.subr.mxu0 0.0
        %406 = vmatpush2.msra.mxu0 0.0
        %407 = vmatprep.subr.mxu0 0.0
        %408 = vmatpush2.msra.mxu0 0.0
        %409 = vmatprep.mubr.f32.mxu0 0.0
        %410 = vmatmul.mubr.f32.gmra.mxu0 %v343
        %v411 = vpop.f32.mrf.mxu0
        %v412 = vadd.f32 %v339, %v411
        %v413 = vpop.f32.mrf.mxu0
        %414 = vdwg.mxu0
        %v415 = vmax.f32 %v412, 0.0
        %416 = vst [vmem:[%s286] sm:$0xff] %v415
        %s417 = sand.u32 %s165, 1
        %s418 = scalar_lea.sflag [#allocation5], %s417
        %s419 = sand.u32 %s165, 1
        %s420 = smul.addr %s419, 8
        %s421 = scalar_lea.vmem [#allocation8], %s420
        // Predicated region
        $region53: #{tpu_custom_call.1} parent=39 // pred_check
          %p422 = pneg %p175
        $region54: #{tpu_custom_call.1} parent=39 // pred_check_branch
          %424 = sbr.rel (%p422) target = $region56
        $region55: #{tpu_custom_call.1} parent=39 // pred_region
          %s426 = ssub.s32 128, 128
          %427 = vsyncadd %s418, %s426
          %s428 = sadd.s32 %s28, %s27
          %s429 = smul.addr %s428, 128
          %s430 = scalar_lea.hbm %s5, %s429
          %s432 = sshll.u32 %s421, 4
          %s433 = int_to_ptr.vmem [resolvable:$true] %s432
          %435 = dma.vmem_to_hbm [thread:$0]  %s433, 128, %s430, %s418
        $region56: #{tpu_custom_call.1} parent=39 // pred_fallthru
          _
      $region40: #{tpu_custom_call.1} parent=5 // pred_fallthru
        _
      %p436 = scmp.le.s32.totalorder 2, %s18
      // Predicated region
      $region57: #{tpu_custom_call.1} parent=5 // pred_check
        %p437 = pneg %p436
      $region58: #{tpu_custom_call.1} parent=5 // pred_check_branch
        %439 = sbr.rel (%p437) target = $region60
      $region59: #{tpu_custom_call.1} parent=5 // pred_region
        %s440 = ssub.s32 %s18, 2
        // Predicated region
        $region61: #{tpu_custom_call.1} parent=59 // pred_check
          %p441 = pneg %p181
        $region62: #{tpu_custom_call.1} parent=59 // pred_check_branch
          %443 = sbr.rel (%p441) target = $region64
        $region63: #{tpu_custom_call.1} parent=59 // pred_region
          %s444 = sand.u32 %s166, 1
          %s445 = scalar_lea.sflag [#allocation5], %s444
          %s446 = sand.u32 %s166, 1
          %s447 = smul.addr %s446, 8
          %s448 = scalar_lea.vmem [#allocation8], %s447
          %449 = dma.done %s445, 128
        $region64: #{tpu_custom_call.1} parent=59 // pred_fallthru
          _
      $region60: #{tpu_custom_call.1} parent=5 // pred_fallthru
        _
    $region6: #{tpu_custom_call.1} parent=1 // loop_footer
      %s22 = sadd.s32 1, %s18
    $region7: #{tpu_custom_call.1} parent=1 // loop_footer_branch
      %17 = sbr.rel target = $region3
    $region8: #{tpu_custom_call.1} parent=1 // loop_exit
      _
    %450 = vsyncpa [#allocation4], 1
    %s451 = scalar_lea.sflag [#allocation4], 1
    %452 = vsyncpa %s451, 1
    %453 = vsyncpa [#allocation7], 1
    %454 = vsyncpa [#allocation5], 1
    %s455 = scalar_lea.sflag [#allocation5], 1
    %456 = vsyncpa %s455, 1

</llo_original>
